<compile_context>
chip_gen: v7x
topology: tpu7x:2x2x1
jax: 0.10.0
libtpu: 0.0.40
codegen_flags: <defaults>
</compile_context>

<pallas_src>
import jax
import jax.numpy as jnp
from jax.experimental import pallas as pl
from jax.experimental.pallas import tpu as pltpu

LN_EPS = 1e-5  # torch.nn.LayerNorm default


def _round_up(x, m):
    return ((x + m - 1) // m) * m


def _elu(x):
    # exp is clamped so the discarded positive branch can never overflow to inf.
    return jnp.where(x > 0, x, jnp.exp(jnp.minimum(x, 0.0)) - 1.0)


def _layernorm(x, gamma, beta, axis):
    # Single-pass variance (E[x^2] - E[x]^2): the two reductions issue
    # back-to-back on the XLU instead of serializing behind (x - mean).
    mean = jnp.mean(x, axis=axis, keepdims=True)
    mean_sq = jnp.mean(x * x, axis=axis, keepdims=True)
    var = jnp.maximum(mean_sq - mean * mean, 0.0)
    inv = jax.lax.rsqrt(var + LN_EPS)
    return (x - mean) * inv * gamma + beta


def actor_kernel(obs_ref,
                 w1_ref, b1_ref, g1_ref, be1_ref,
                 w2_ref, b2_ref, g2_ref, be2_ref,
                 wmu_ref, bmu_ref,
                 std_ref, eps_ref,
                 out_ref):
    # Everything below is feature-major: arrays are [features, batch_tile] so
    # the batch occupies the 128-wide lane dimension (lane-dense loads/stores).
    x = obs_ref[...].astype(jnp.bfloat16)                       # [obs_dim, T]

    # ---- actor_mlp layer 1: Linear -> ELU -> LayerNorm ----
    h = jnp.dot(w1_ref[...], x, preferred_element_type=jnp.float32) + b1_ref[...]
    h = _layernorm(_elu(h), g1_ref[...], be1_ref[...], axis=0)

    # ---- actor_mlp layer 2: Linear -> ELU -> LayerNorm ----
    h = jnp.dot(w2_ref[...], h.astype(jnp.bfloat16),
                preferred_element_type=jnp.float32) + b2_ref[...]
    h = _layernorm(_elu(h), g2_ref[...], be2_ref[...], axis=0)

    # ---- mu head (identity activation) ----
    mu = jnp.dot(wmu_ref[...], h.astype(jnp.bfloat16),
                 preferred_element_type=jnp.float32) + bmu_ref[...]

    # ---- fixed-sigma reparameterized sample: mu + std * eps ----
    out_ref[...] = mu + std_ref[...] * eps_ref[...]             # [action_dim, T]


def grad_actor_forward(obs, params, eps, *, batch_tile=None):
    """obs: [B, obs_dim] f32.  eps: [B, action_dim] f32.  Returns [B, action_dim] f32."""
    B, obs_dim = obs.shape
    action_dim, h2 = params["w_mu"].shape
    h1 = params["w1"].shape[0]
    assert params["w2"].shape == (h2, h1)
    assert eps.shape == (B, action_dim)

    if batch_tile is None:
        batch_tile = 512
        # Shrink so the parallel grid axis has >= 2 steps when the batch allows
        # (lets dimension_semantics=("parallel",) shard onto both v7x TCs).
        while batch_tile > 128 and B <= batch_tile:
            batch_tile //= 2
    assert batch_tile % 128 == 0, "batch_tile must be a multiple of the 128-lane width"

    padded_b = _round_up(B, batch_tile)
    n_tiles = padded_b // batch_tile

    # Lane-dense layout: batch on the last axis; zero-pad ragged batches.
    obs_t = obs.astype(jnp.float32).T                           # [obs_dim, B]
    eps_t = eps.astype(jnp.float32).T                           # [action_dim, B]
    if padded_b != B:
        pad = ((0, 0), (0, padded_b - B))
        obs_t = jnp.pad(obs_t, pad)
        eps_t = jnp.pad(eps_t, pad)

    # Grid-invariant: exp(logstd) hoisted out of the kernel.
    std = jnp.exp(params["logstd"].astype(jnp.float32))         # [action_dim, 1]

    def replicated(shape):
        return pl.BlockSpec(shape, lambda i: (0, 0))

    in_specs = [
        pl.BlockSpec((obs_dim, batch_tile), lambda i: (0, i)),      # obs (transposed)
        replicated((h1, obs_dim)), replicated((h1, 1)),
        replicated((h1, 1)), replicated((h1, 1)),
        replicated((h2, h1)), replicated((h2, 1)),
        replicated((h2, 1)), replicated((h2, 1)),
        replicated((action_dim, h2)), replicated((action_dim, 1)),
        replicated((action_dim, 1)),                                # std
        pl.BlockSpec((action_dim, batch_tile), lambda i: (0, i)),   # eps (transposed)
    ]
    out_specs = pl.BlockSpec((action_dim, batch_tile), lambda i: (0, i))

    # Advisory cost so XLA schedules surrounding ops to overlap this kernel.
    flops = 2 * padded_b * (obs_dim * h1 + h1 * h2 + h2 * action_dim)
    transcendentals = padded_b * (h1 + h2 + 2)
    bytes_accessed = (4 * padded_b * (obs_dim + 2 * action_dim)
                      + 2 * (h1 * obs_dim + h2 * h1 + action_dim * h2)
                      + 4 * (3 * h1 + 3 * h2 + 2 * action_dim))
    cost = pl.CostEstimate(flops=flops, transcendentals=transcendentals,
                           bytes_accessed=bytes_accessed)

    # VMEM budget: double-buffered streamed tiles + resident params + live
    # activations + headroom, clamped safe for v7x's 64 MiB physical VMEM.
    stream_bytes = 4 * batch_tile * (obs_dim + 2 * action_dim)
    act_bytes = 4 * batch_tile * (h1 + h2 + action_dim)
    param_bytes = (2 * (h1 * obs_dim + h2 * h1 + action_dim * h2)
                   + 4 * (3 * h1 + 3 * h2 + 2 * action_dim))
    vmem_limit = int(min(max(4 * stream_bytes + 4 * act_bytes + 2 * param_bytes
                             + (4 << 20), 16 << 20), 48 << 20))

    out_t = pl.pallas_call(
        actor_kernel,
        out_shape=jax.ShapeDtypeStruct((action_dim, padded_b), jnp.float32),
        grid_spec=pltpu.PrefetchScalarGridSpec(
            num_scalar_prefetch=0,
            grid=(n_tiles,),
            in_specs=in_specs,
            out_specs=out_specs,
        ),
        compiler_params=pltpu.CompilerParams(
            dimension_semantics=("parallel",),
            vmem_limit_bytes=vmem_limit,
        ),
        cost_estimate=cost,
    )(obs_t,
      params["w1"], params["b1"], params["g1"], params["beta1"],
      params["w2"], params["b2"], params["g2"], params["beta2"],
      params["w_mu"], params["b_mu"],
      std, eps_t)

    return out_t[:, :B].T                                       # [B, action_dim]


def init_params(key, obs_dim, units, action_dim, logstd_init=-1.0):
    """Deterministic synthetic init.  Weights stored [out, in] in bf16; bias /
    LayerNorm affine / logstd stored as [out, 1] column vectors in f32."""
    dims = [obs_dim] + list(units)
    ks = jax.random.split(key, 6)
    p = {}
    p["w1"] = (0.1 * jax.random.normal(ks[0], (dims[1], dims[0]), jnp.float32)
               ).astype(jnp.bfloat16)
    p["b1"] = 0.01 * jax.random.normal(ks[1], (dims[1], 1), jnp.float32)
    p["g1"] = jnp.ones((dims[1], 1), jnp.float32)
    p["beta1"] = jnp.zeros((dims[1], 1), jnp.float32)
    p["w2"] = (0.1 * jax.random.normal(ks[2], (dims[2], dims[1]), jnp.float32)
               ).astype(jnp.bfloat16)
    p["b2"] = 0.01 * jax.random.normal(ks[3], (dims[2], 1), jnp.float32)
    p["g2"] = jnp.ones((dims[2], 1), jnp.float32)
    p["beta2"] = jnp.zeros((dims[2], 1), jnp.float32)
    p["w_mu"] = (0.1 * jax.random.normal(ks[4], (action_dim, dims[2]), jnp.float32)
                 ).astype(jnp.bfloat16)
    p["b_mu"] = 0.01 * jax.random.normal(ks[5], (action_dim, 1), jnp.float32)
    p["logstd"] = jnp.full((action_dim, 1), logstd_init, jnp.float32)
    return p


def reference_forward(obs, params, eps, matmul_dtype=jnp.float32):
    """Pure-JAX batch-major reference mirroring the PyTorch forward
    (fixed_sigma path).  matmul_dtype=bf16 mirrors the kernel's MXU operands."""
    def dot(a, w):  # w stored [out, in]
        return jnp.dot(a.astype(matmul_dtype), w.astype(matmul_dtype).T,
                       preferred_element_type=jnp.float32)

    h = dot(obs, params["w1"]) + params["b1"].T
    h = _layernorm(_elu(h), params["g1"].T, params["beta1"].T, axis=-1)
    h = dot(h, params["w2"]) + params["b2"].T
    h = _layernorm(_elu(h), params["g2"].T, params["beta2"].T, axis=-1)
    mu = dot(h, params["w_mu"]) + params["b_mu"].T
    std = jnp.exp(params["logstd"].astype(jnp.float32)).T
    return mu + std * eps


if __name__ == "__main__":
    obs_dim = 24
    units = [32, 32]
    action_dim = 8
    batch = 300          # deliberately not a multiple of 128: exercises padding

    key = jax.random.PRNGKey(0)
    k_params, k_obs, k_eps = jax.random.split(key, 3)

    params = init_params(k_params, obs_dim, units, action_dim)
    obs = jax.random.normal(k_obs, (batch, obs_dim), jnp.float32)
    eps = jax.random.normal(k_eps, (batch, action_dim), jnp.float32)

    sample = grad_actor_forward(obs, params, eps)   # default tile -> grid (2,)
    sample = jax.block_until_ready(sample)
    assert sample.shape == (batch, action_dim)
    assert bool(jnp.all(jnp.isfinite(sample)))

    # Matches a reference using the same bf16 MXU operand precision...
    ref_bf16 = reference_forward(obs, params, eps, matmul_dtype=jnp.bfloat16)
    assert jnp.allclose(sample, ref_bf16, atol=1e-2, rtol=1e-2), \
        "mismatch vs bf16-matmul reference"

    # ...and stays close to the full-f32 reference (bf16 operand rounding only).
    ref_f32 = reference_forward(obs, params, eps, matmul_dtype=jnp.float32)
    assert jnp.allclose(sample, ref_f32, atol=5e-2, rtol=5e-2), \
        "mismatch vs f32 reference"

    print("KERNEL_OK")
</pallas_src>

<mosaic_0001>
module attributes {stable_mosaic.version = 11 : i64} {
  func.func @actor_kernel(%arg0: i32, %arg1: memref<24x256xf32, #tpu.memory_space<vmem>>, %arg2: memref<32x24xbf16, #tpu.memory_space<vmem>>, %arg3: memref<32x1xf32, #tpu.memory_space<vmem>>, %arg4: memref<32x1xf32, #tpu.memory_space<vmem>>, %arg5: memref<32x1xf32, #tpu.memory_space<vmem>>, %arg6: memref<32x32xbf16, #tpu.memory_space<vmem>>, %arg7: memref<32x1xf32, #tpu.memory_space<vmem>>, %arg8: memref<32x1xf32, #tpu.memory_space<vmem>>, %arg9: memref<32x1xf32, #tpu.memory_space<vmem>>, %arg10: memref<8x32xbf16, #tpu.memory_space<vmem>>, %arg11: memref<8x1xf32, #tpu.memory_space<vmem>>, %arg12: memref<8x1xf32, #tpu.memory_space<vmem>>, %arg13: memref<8x256xf32, #tpu.memory_space<vmem>>, %arg14: memref<8x256xf32, #tpu.memory_space<vmem>>) attributes {dimension_semantics = [#tpu.dimension_semantics<parallel>], iteration_bounds = array<i64: 2>, scalar_prefetch = 0 : i64, scratch_operands = 0 : i64, tpu.core_type = #tpu.core_type<tc>, window_params = [{transform_indices = @transform_0, window_bounds = array<i64: 24, 256>}, {pipeline_mode = #tpu.pipeline_mode<synchronous>, transform_indices = @transform_1, window_bounds = array<i64: 32, 24>}, {pipeline_mode = #tpu.pipeline_mode<synchronous>, transform_indices = @transform_2, window_bounds = array<i64: 32, 1>}, {pipeline_mode = #tpu.pipeline_mode<synchronous>, transform_indices = @transform_3, window_bounds = array<i64: 32, 1>}, {pipeline_mode = #tpu.pipeline_mode<synchronous>, transform_indices = @transform_4, window_bounds = array<i64: 32, 1>}, {pipeline_mode = #tpu.pipeline_mode<synchronous>, transform_indices = @transform_5, window_bounds = array<i64: 32, 32>}, {pipeline_mode = #tpu.pipeline_mode<synchronous>, transform_indices = @transform_6, window_bounds = array<i64: 32, 1>}, {pipeline_mode = #tpu.pipeline_mode<synchronous>, transform_indices = @transform_7, window_bounds = array<i64: 32, 1>}, {pipeline_mode = #tpu.pipeline_mode<synchronous>, transform_indices = @transform_8, window_bounds = array<i64: 32, 1>}, {pipeline_mode = #tpu.pipeline_mode<synchronous>, transform_indices = @transform_9, window_bounds = array<i64: 8, 32>}, {pipeline_mode = #tpu.pipeline_mode<synchronous>, transform_indices = @transform_10, window_bounds = array<i64: 8, 1>}, {pipeline_mode = #tpu.pipeline_mode<synchronous>, transform_indices = @transform_11, window_bounds = array<i64: 8, 1>}, {transform_indices = @transform_12, window_bounds = array<i64: 8, 256>}, {transform_indices = @transform_13, window_bounds = array<i64: 8, 256>}]} {
    %c0 = arith.constant 0 : index
    %c0_0 = arith.constant 0 : index
    %0 = vector.load %arg1[%c0, %c0_0] : memref<24x256xf32, #tpu.memory_space<vmem>>, vector<24x256xf32>
    %1 = arith.truncf %0 : vector<24x256xf32> to vector<24x256xbf16>
    %c0_1 = arith.constant 0 : index
    %c0_2 = arith.constant 0 : index
    %2 = vector.load %arg2[%c0_1, %c0_2] : memref<32x24xbf16, #tpu.memory_space<vmem>>, vector<32x24xbf16>
    %cst = arith.constant dense<0.000000e+00> : vector<32x256xf32>
    %3 = tpu.matmul %2, %1, %cst {dimension_numbers = #tpu.dot_dimension_numbers<[1], [0], [0], [1], [0, 0, 1, 1], [], []>} : vector<32x24xbf16>, vector<24x256xbf16>, vector<32x256xf32> -> vector<32x256xf32>
    %c0_3 = arith.constant 0 : index
    %c0_4 = arith.constant 0 : index
    %4 = vector.load %arg3[%c0_3, %c0_4] : memref<32x1xf32, #tpu.memory_space<vmem>>, vector<32x1xf32>
    %5 = vector.broadcast %4 : vector<32x1xf32> to vector<32x256xf32>
    %6 = arith.addf %3, %5 : vector<32x256xf32>
    %cst_5 = arith.constant 0.000000e+00 : f32
    %7 = vector.broadcast %cst_5 : f32 to vector<32x256xf32>
    %8 = arith.cmpf ogt, %6, %7 : vector<32x256xf32>
    %cst_6 = arith.constant 0.000000e+00 : f32
    %9 = vector.broadcast %cst_6 : f32 to vector<32x256xf32>
    %10 = arith.minimumf %6, %9 : vector<32x256xf32>
    %11 = math.exp %10 : vector<32x256xf32>
    %cst_7 = arith.constant 1.000000e+00 : f32
    %12 = vector.broadcast %cst_7 : f32 to vector<32x256xf32>
    %13 = arith.subf %11, %12 : vector<32x256xf32>
    %14 = arith.select %8, %6, %13 : vector<32x256xi1>, vector<32x256xf32>
    %c0_8 = arith.constant 0 : index
    %c0_9 = arith.constant 0 : index
    %15 = vector.load %arg4[%c0_8, %c0_9] : memref<32x1xf32, #tpu.memory_space<vmem>>, vector<32x1xf32>
    %c0_10 = arith.constant 0 : index
    %c0_11 = arith.constant 0 : index
    %16 = vector.load %arg5[%c0_10, %c0_11] : memref<32x1xf32, #tpu.memory_space<vmem>>, vector<32x1xf32>
    %cst_12 = arith.constant dense<0.000000e+00> : vector<256xf32>
    %17 = vector.multi_reduction <add>, %14, %cst_12 [0] : vector<32x256xf32> to vector<256xf32>
    %18 = vector.shape_cast %17 : vector<256xf32> to vector<1x256xf32>
    %cst_13 = arith.constant 3.200000e+01 : f32
    %19 = vector.broadcast %cst_13 : f32 to vector<1x256xf32>
    %20 = arith.divf %18, %19 : vector<1x256xf32>
    %21 = arith.mulf %14, %14 : vector<32x256xf32>
    %cst_14 = arith.constant dense<0.000000e+00> : vector<256xf32>
    %22 = vector.multi_reduction <add>, %21, %cst_14 [0] : vector<32x256xf32> to vector<256xf32>
    %23 = vector.shape_cast %22 : vector<256xf32> to vector<1x256xf32>
    %cst_15 = arith.constant 3.200000e+01 : f32
    %24 = vector.broadcast %cst_15 : f32 to vector<1x256xf32>
    %25 = arith.divf %23, %24 : vector<1x256xf32>
    %26 = arith.mulf %20, %20 : vector<1x256xf32>
    %27 = arith.subf %25, %26 : vector<1x256xf32>
    %cst_16 = arith.constant 0.000000e+00 : f32
    %28 = vector.broadcast %cst_16 : f32 to vector<1x256xf32>
    %29 = arith.maximumf %27, %28 : vector<1x256xf32>
    %cst_17 = arith.constant 9.99999974E-6 : f32
    %30 = vector.broadcast %cst_17 : f32 to vector<1x256xf32>
    %31 = arith.addf %29, %30 : vector<1x256xf32>
    %32 = math.rsqrt %31 : vector<1x256xf32>
    %33 = vector.broadcast %20 : vector<1x256xf32> to vector<32x256xf32>
    %34 = arith.subf %14, %33 : vector<32x256xf32>
    %35 = vector.broadcast %32 : vector<1x256xf32> to vector<32x256xf32>
    %36 = arith.mulf %34, %35 : vector<32x256xf32>
    %37 = vector.broadcast %15 : vector<32x1xf32> to vector<32x256xf32>
    %38 = arith.mulf %36, %37 : vector<32x256xf32>
    %39 = vector.broadcast %16 : vector<32x1xf32> to vector<32x256xf32>
    %40 = arith.addf %38, %39 : vector<32x256xf32>
    %c0_18 = arith.constant 0 : index
    %c0_19 = arith.constant 0 : index
    %41 = vector.load %arg6[%c0_18, %c0_19] : memref<32x32xbf16, #tpu.memory_space<vmem>>, vector<32x32xbf16>
    %42 = arith.truncf %40 : vector<32x256xf32> to vector<32x256xbf16>
    %cst_20 = arith.constant dense<0.000000e+00> : vector<32x256xf32>
    %43 = tpu.matmul %41, %42, %cst_20 {dimension_numbers = #tpu.dot_dimension_numbers<[1], [0], [0], [1], [0, 0, 1, 1], [], []>} : vector<32x32xbf16>, vector<32x256xbf16>, vector<32x256xf32> -> vector<32x256xf32>
    %c0_21 = arith.constant 0 : index
    %c0_22 = arith.constant 0 : index
    %44 = vector.load %arg7[%c0_21, %c0_22] : memref<32x1xf32, #tpu.memory_space<vmem>>, vector<32x1xf32>
    %45 = vector.broadcast %44 : vector<32x1xf32> to vector<32x256xf32>
    %46 = arith.addf %43, %45 : vector<32x256xf32>
    %cst_23 = arith.constant 0.000000e+00 : f32
    %47 = vector.broadcast %cst_23 : f32 to vector<32x256xf32>
    %48 = arith.cmpf ogt, %46, %47 : vector<32x256xf32>
    %cst_24 = arith.constant 0.000000e+00 : f32
    %49 = vector.broadcast %cst_24 : f32 to vector<32x256xf32>
    %50 = arith.minimumf %46, %49 : vector<32x256xf32>
    %51 = math.exp %50 : vector<32x256xf32>
    %cst_25 = arith.constant 1.000000e+00 : f32
    %52 = vector.broadcast %cst_25 : f32 to vector<32x256xf32>
    %53 = arith.subf %51, %52 : vector<32x256xf32>
    %54 = arith.select %48, %46, %53 : vector<32x256xi1>, vector<32x256xf32>
    %c0_26 = arith.constant 0 : index
    %c0_27 = arith.constant 0 : index
    %55 = vector.load %arg8[%c0_26, %c0_27] : memref<32x1xf32, #tpu.memory_space<vmem>>, vector<32x1xf32>
    %c0_28 = arith.constant 0 : index
    %c0_29 = arith.constant 0 : index
    %56 = vector.load %arg9[%c0_28, %c0_29] : memref<32x1xf32, #tpu.memory_space<vmem>>, vector<32x1xf32>
    %cst_30 = arith.constant dense<0.000000e+00> : vector<256xf32>
    %57 = vector.multi_reduction <add>, %54, %cst_30 [0] : vector<32x256xf32> to vector<256xf32>
    %58 = vector.shape_cast %57 : vector<256xf32> to vector<1x256xf32>
    %cst_31 = arith.constant 3.200000e+01 : f32
    %59 = vector.broadcast %cst_31 : f32 to vector<1x256xf32>
    %60 = arith.divf %58, %59 : vector<1x256xf32>
    %61 = arith.mulf %54, %54 : vector<32x256xf32>
    %cst_32 = arith.constant dense<0.000000e+00> : vector<256xf32>
    %62 = vector.multi_reduction <add>, %61, %cst_32 [0] : vector<32x256xf32> to vector<256xf32>
    %63 = vector.shape_cast %62 : vector<256xf32> to vector<1x256xf32>
    %cst_33 = arith.constant 3.200000e+01 : f32
    %64 = vector.broadcast %cst_33 : f32 to vector<1x256xf32>
    %65 = arith.divf %63, %64 : vector<1x256xf32>
    %66 = arith.mulf %60, %60 : vector<1x256xf32>
    %67 = arith.subf %65, %66 : vector<1x256xf32>
    %cst_34 = arith.constant 0.000000e+00 : f32
    %68 = vector.broadcast %cst_34 : f32 to vector<1x256xf32>
    %69 = arith.maximumf %67, %68 : vector<1x256xf32>
    %cst_35 = arith.constant 9.99999974E-6 : f32
    %70 = vector.broadcast %cst_35 : f32 to vector<1x256xf32>
    %71 = arith.addf %69, %70 : vector<1x256xf32>
    %72 = math.rsqrt %71 : vector<1x256xf32>
    %73 = vector.broadcast %60 : vector<1x256xf32> to vector<32x256xf32>
    %74 = arith.subf %54, %73 : vector<32x256xf32>
    %75 = vector.broadcast %72 : vector<1x256xf32> to vector<32x256xf32>
    %76 = arith.mulf %74, %75 : vector<32x256xf32>
    %77 = vector.broadcast %55 : vector<32x1xf32> to vector<32x256xf32>
    %78 = arith.mulf %76, %77 : vector<32x256xf32>
    %79 = vector.broadcast %56 : vector<32x1xf32> to vector<32x256xf32>
    %80 = arith.addf %78, %79 : vector<32x256xf32>
    %c0_36 = arith.constant 0 : index
    %c0_37 = arith.constant 0 : index
    %81 = vector.load %arg10[%c0_36, %c0_37] : memref<8x32xbf16, #tpu.memory_space<vmem>>, vector<8x32xbf16>
    %82 = arith.truncf %80 : vector<32x256xf32> to vector<32x256xbf16>
    %cst_38 = arith.constant dense<0.000000e+00> : vector<8x256xf32>
    %83 = tpu.matmul %81, %82, %cst_38 {dimension_numbers = #tpu.dot_dimension_numbers<[1], [0], [0], [1], [0, 0, 1, 1], [], []>} : vector<8x32xbf16>, vector<32x256xbf16>, vector<8x256xf32> -> vector<8x256xf32>
    %c0_39 = arith.constant 0 : index
    %c0_40 = arith.constant 0 : index
    %84 = vector.load %arg11[%c0_39, %c0_40] : memref<8x1xf32, #tpu.memory_space<vmem>>, vector<8x1xf32>
    %85 = vector.broadcast %84 : vector<8x1xf32> to vector<8x256xf32>
    %86 = arith.addf %83, %85 : vector<8x256xf32>
    %c0_41 = arith.constant 0 : index
    %c0_42 = arith.constant 0 : index
    %87 = vector.load %arg12[%c0_41, %c0_42] : memref<8x1xf32, #tpu.memory_space<vmem>>, vector<8x1xf32>
    %c0_43 = arith.constant 0 : index
    %c0_44 = arith.constant 0 : index
    %88 = vector.load %arg13[%c0_43, %c0_44] : memref<8x256xf32, #tpu.memory_space<vmem>>, vector<8x256xf32>
    %89 = vector.broadcast %87 : vector<8x1xf32> to vector<8x256xf32>
    %90 = arith.mulf %89, %88 : vector<8x256xf32>
    %91 = arith.addf %86, %90 : vector<8x256xf32>
    %c0_45 = arith.constant 0 : index
    %c0_46 = arith.constant 0 : index
    %92 = vector.load %arg14[%c0_45, %c0_46] : memref<8x256xf32, #tpu.memory_space<vmem>>, vector<8x256xf32>
    tpu.vector_store %arg14[%c0_45, %c0_46], %91 {strides = array<i32>} : memref<8x256xf32, #tpu.memory_space<vmem>>, vector<8x256xf32>,
    return
  }
  func.func @transform_0(%arg0: i32) -> (i32, i32) {
    %c0_i32 = arith.constant 0 : i32
    %c0_i32_0 = arith.constant 0 : i32
    return %c0_i32, %arg0 : i32, i32
  }
  func.func @transform_1(%arg0: i32) -> (i32, i32) {
    %c0_i32 = arith.constant 0 : i32
    %c0_i32_0 = arith.constant 0 : i32
    %c0_i32_1 = arith.constant 0 : i32
    return %c0_i32, %c0_i32_0 : i32, i32
  }
  func.func @transform_2(%arg0: i32) -> (i32, i32) {
    %c0_i32 = arith.constant 0 : i32
    %c0_i32_0 = arith.constant 0 : i32
    %c0_i32_1 = arith.constant 0 : i32
    return %c0_i32, %c0_i32_0 : i32, i32
  }
  func.func @transform_3(%arg0: i32) -> (i32, i32) {
    %c0_i32 = arith.constant 0 : i32
    %c0_i32_0 = arith.constant 0 : i32
    %c0_i32_1 = arith.constant 0 : i32
    return %c0_i32, %c0_i32_0 : i32, i32
  }
  func.func @transform_4(%arg0: i32) -> (i32, i32) {
    %c0_i32 = arith.constant 0 : i32
    %c0_i32_0 = arith.constant 0 : i32
    %c0_i32_1 = arith.constant 0 : i32
    return %c0_i32, %c0_i32_0 : i32, i32
  }
  func.func @transform_5(%arg0: i32) -> (i32, i32) {
    %c0_i32 = arith.constant 0 : i32
    %c0_i32_0 = arith.constant 0 : i32
    %c0_i32_1 = arith.constant 0 : i32
    return %c0_i32, %c0_i32_0 : i32, i32
  }
  func.func @transform_6(%arg0: i32) -> (i32, i32) {
    %c0_i32 = arith.constant 0 : i32
    %c0_i32_0 = arith.constant 0 : i32
    %c0_i32_1 = arith.constant 0 : i32
    return %c0_i32, %c0_i32_0 : i32, i32
  }
  func.func @transform_7(%arg0: i32) -> (i32, i32) {
    %c0_i32 = arith.constant 0 : i32
    %c0_i32_0 = arith.constant 0 : i32
    %c0_i32_1 = arith.constant 0 : i32
    return %c0_i32, %c0_i32_0 : i32, i32
  }
  func.func @transform_8(%arg0: i32) -> (i32, i32) {
    %c0_i32 = arith.constant 0 : i32
    %c0_i32_0 = arith.constant 0 : i32
    %c0_i32_1 = arith.constant 0 : i32
    return %c0_i32, %c0_i32_0 : i32, i32
  }
  func.func @transform_9(%arg0: i32) -> (i32, i32) {
    %c0_i32 = arith.constant 0 : i32
    %c0_i32_0 = arith.constant 0 : i32
    %c0_i32_1 = arith.constant 0 : i32
    return %c0_i32, %c0_i32_0 : i32, i32
  }
  func.func @transform_10(%arg0: i32) -> (i32, i32) {
    %c0_i32 = arith.constant 0 : i32
    %c0_i32_0 = arith.constant 0 : i32
    %c0_i32_1 = arith.constant 0 : i32
    return %c0_i32, %c0_i32_0 : i32, i32
  }
  func.func @transform_11(%arg0: i32) -> (i32, i32) {
    %c0_i32 = arith.constant 0 : i32
    %c0_i32_0 = arith.constant 0 : i32
    %c0_i32_1 = arith.constant 0 : i32
    return %c0_i32, %c0_i32_0 : i32, i32
  }
  func.func @transform_12(%arg0: i32) -> (i32, i32) {
    %c0_i32 = arith.constant 0 : i32
    %c0_i32_0 = arith.constant 0 : i32
    return %c0_i32, %arg0 : i32, i32
  }
  func.func @transform_13(%arg0: i32) -> (i32, i32) {
    %c0_i32 = arith.constant 0 : i32
    %c0_i32_0 = arith.constant 0 : i32
    return %c0_i32, %arg0 : i32, i32
  }
}

</mosaic_0001>

<llo_original>
// kernel: tpu_custom_call.1
$region0: #{tpu_custom_call.1}
  #allocation0 [shape = 'u32[]', space=smem, size = 0x4, offset = 0x4, fixed_abs, tag = 'smem constant byte address 0x4 - core index']
  #allocation1 [shape = 'u32[144,128]{1,0:T(1,128)}', space=vmem, size = 0x12000, scoped, tag = 'internal scratch']
  %s0 = inlined_call_operand.vmem [shape: f32[24,512], index: 0, kind: input, shape index: {}]
  %s1 = inlined_call_operand.vmem [shape: bf16[32,24], index: 1, kind: input, shape index: {}]
  %s2 = inlined_call_operand.vmem [shape: f32[32,1], index: 2, kind: input, shape index: {}]
  %s3 = inlined_call_operand.vmem [shape: f32[32,1], index: 3, kind: input, shape index: {}]
  %s4 = inlined_call_operand.vmem [shape: f32[32,1], index: 4, kind: input, shape index: {}]
  %s5 = inlined_call_operand.vmem [shape: bf16[32,32], index: 5, kind: input, shape index: {}]
  %s6 = inlined_call_operand.vmem [shape: f32[32,1], index: 6, kind: input, shape index: {}]
  %s7 = inlined_call_operand.vmem [shape: f32[32,1], index: 7, kind: input, shape index: {}]
  %s8 = inlined_call_operand.vmem [shape: f32[32,1], index: 8, kind: input, shape index: {}]
  %s9 = inlined_call_operand.vmem [shape: bf16[8,32], index: 9, kind: input, shape index: {}]
  %s10 = inlined_call_operand.vmem [shape: f32[8,1], index: 10, kind: input, shape index: {}]
  %s11 = inlined_call_operand.vmem [shape: f32[8,1], index: 11, kind: input, shape index: {}]
  %s12 = inlined_call_operand.vmem [shape: f32[8,512], index: 12, kind: input, shape index: {}]
  %s13 = inlined_call_operand.hbm [shape: f32[8,512], index: 13, kind: output, shape index: {}]
  %s14 = sld [smem:[#allocation0]]
  $region108: #{tpu_custom_call.1} parent=0
    _
  %s16 = ssub.s32 1, %s14
  %s17 = scalar_select 0, %s16, %s14
  $region1: #{tpu_custom_call.1} parent=0
    #allocation2 [shape = 'u8[49152]{0}', space=vmem, size = 0xc000, scoped, tag = 'input window, operand 0']
    #allocation3 [shape = 'u8[16384]{0}', space=vmem, size = 0x4000, scoped, tag = 'output window, operand 0']
    #allocation4 [shape = 's32[2]{0}', space=sflag, size = 0x8, scoped, tag = 'scoped memory for tpu_custom_call.1']
    %18 = vsyncpa [#allocation4], 0
    %s19 = scalar_lea.sflag [#allocation4], 1
    %20 = vsyncpa %s19, 0
    loop: start=0, step=1, limit=4
    $region2: #{tpu_custom_call.1} parent=1 // loop_pre_header
      _
    $region3: #{tpu_custom_call.1} parent=1 // loop_header
      %s22 = sphi 0, %s26
      %p23 = scmp.ge.s32.totalorder %s22, 4
      %s32 = sphi 0, %s34
      %s35 = sphi 0, %s32
      %s36 = sphi 0, %s35
      %s52 = sphi 0, %s36
      %s56 = sphi 0, %s56
      %s58 = sphi 0, %s56
      %s59 = sphi 0, %s58
      %s73 = sphi 0, %s59
      %s77 = sphi 0, %s77
      %s79 = sphi 0, %s77
      %s80 = sphi 0, %s79
      %s94 = sphi 0, %s80
      %s98 = sphi 0, %s98
      %s100 = sphi 0, %s98
      %s101 = sphi 0, %s100
      %s115 = sphi 0, %s101
      %s119 = sphi 0, %s119
      %s121 = sphi 0, %s119
      %s122 = sphi 0, %s121
      %s136 = sphi 0, %s122
      %s140 = sphi 0, %s140
      %s142 = sphi 0, %s140
      %s143 = sphi 0, %s142
      %s157 = sphi 0, %s143
      %s161 = sphi 0, %s161
      %s163 = sphi 0, %s161
      %s164 = sphi 0, %s163
      %s178 = sphi 0, %s164
      %s182 = sphi 0, %s182
      %s184 = sphi 0, %s182
      %s185 = sphi 0, %s184
      %s199 = sphi 0, %s185
      %s203 = sphi 0, %s203
      %s205 = sphi 0, %s203
      %s206 = sphi 0, %s205
      %s220 = sphi 0, %s206
      %s224 = sphi 0, %s224
      %s226 = sphi 0, %s224
      %s227 = sphi 0, %s226
      %s241 = sphi 0, %s227
      %s245 = sphi 0, %s245
      %s247 = sphi 0, %s245
      %s248 = sphi 0, %s247
      %s262 = sphi 0, %s248
      %s266 = sphi 0, %s266
      %s268 = sphi 0, %s266
      %s269 = sphi 0, %s268
      %s283 = sphi 0, %s269
      %s289 = sphi 0, %s291
      %s292 = sphi 0, %s289
      %s293 = sphi 0, %s292
      %s309 = sphi 0, %s293
      %s315 = sphi 0, %s317
      %s318 = sphi 0, %s315
      %s319 = sphi 0, %s318
      %s335 = sphi 0, %s319
    $region4: #{tpu_custom_call.1} parent=1 // loop_header_branch
      %25 = sbr.rel (%p23) target = $region8
    $region5: #{tpu_custom_call.1} parent=1 // loop_body
      %s27 = ssub.s32 %s22, 1
      %s28 = ssub.s32 %s22, 2
      %s29 = sadd.s32 %s22, 1
      %s30 = ssub.s32 %s22, %s29
      %p31 = scmp.eq.s32.totalorder %s30, 0
      %s33 = sadd.s32 %s32, 1
      %s34 = scalar_select %p31, %s32, %s33
      %p37 = pneg %p31
      %p38 = scmp.eq.s32.totalorder %s22, 1
      %p39 = por %p37, %p38
      %p40 = scmp.ne.s32.totalorder %s32, %s35
      %p41 = scmp.eq.s32.totalorder %s22, 0
      %p42 = por %p40, %p41
      %p43 = scmp.ne.s32.totalorder %s32, %s35
      %p44 = scmp.eq.s32.totalorder %s27, 1
      %p45 = por %p43, %p44
      %p46 = scmp.ne.s32.totalorder %s35, %s36
      %p47 = scmp.eq.s32.totalorder %s27, 0
      %p48 = por %p46, %p47
      %p49 = scmp.ne.s32.totalorder %s35, %s36
      %p50 = scmp.eq.s32.totalorder %s28, 1
      %p51 = por %p49, %p50
      %p53 = scmp.ne.s32.totalorder %s36, %s52
      %p54 = scmp.eq.s32.totalorder %s28, 0
      %p55 = por %p53, %p54
      %s57 = sadd.s32 %s56, 1
      %p60 = scmp.eq.s32.totalorder %s22, 1
      %p61 = scmp.ne.s32.totalorder %s56, %s58
      %p62 = scmp.eq.s32.totalorder %s22, 0
      %p63 = por %p61, %p62
      %p64 = scmp.ne.s32.totalorder %s56, %s58
      %p65 = scmp.eq.s32.totalorder %s27, 1
      %p66 = por %p64, %p65
      %p67 = scmp.ne.s32.totalorder %s58, %s59
      %p68 = scmp.eq.s32.totalorder %s27, 0
      %p69 = por %p67, %p68
      %p70 = scmp.ne.s32.totalorder %s58, %s59
      %p71 = scmp.eq.s32.totalorder %s28, 1
      %p72 = por %p70, %p71
      %p74 = scmp.ne.s32.totalorder %s59, %s73
      %p75 = scmp.eq.s32.totalorder %s28, 0
      %p76 = por %p74, %p75
      %s78 = sadd.s32 %s77, 1
      %p81 = scmp.eq.s32.totalorder %s22, 1
      %p82 = scmp.ne.s32.totalorder %s77, %s79
      %p83 = scmp.eq.s32.totalorder %s22, 0
      %p84 = por %p82, %p83
      %p85 = scmp.ne.s32.totalorder %s77, %s79
      %p86 = scmp.eq.s32.totalorder %s27, 1
      %p87 = por %p85, %p86
      %p88 = scmp.ne.s32.totalorder %s79, %s80
      %p89 = scmp.eq.s32.totalorder %s27, 0
      %p90 = por %p88, %p89
      %p91 = scmp.ne.s32.totalorder %s79, %s80
      %p92 = scmp.eq.s32.totalorder %s28, 1
      %p93 = por %p91, %p92
      %p95 = scmp.ne.s32.totalorder %s80, %s94
      %p96 = scmp.eq.s32.totalorder %s28, 0
      %p97 = por %p95, %p96
      %s99 = sadd.s32 %s98, 1
      %p102 = scmp.eq.s32.totalorder %s22, 1
      %p103 = scmp.ne.s32.totalorder %s98, %s100
      %p104 = scmp.eq.s32.totalorder %s22, 0
      %p105 = por %p103, %p104
      %p106 = scmp.ne.s32.totalorder %s98, %s100
      %p107 = scmp.eq.s32.totalorder %s27, 1
      %p108 = por %p106, %p107
      %p109 = scmp.ne.s32.totalorder %s100, %s101
      %p110 = scmp.eq.s32.totalorder %s27, 0
      %p111 = por %p109, %p110
      %p112 = scmp.ne.s32.totalorder %s100, %s101
      %p113 = scmp.eq.s32.totalorder %s28, 1
      %p114 = por %p112, %p113
      %p116 = scmp.ne.s32.totalorder %s101, %s115
      %p117 = scmp.eq.s32.totalorder %s28, 0
      %p118 = por %p116, %p117
      %s120 = sadd.s32 %s119, 1
      %p123 = scmp.eq.s32.totalorder %s22, 1
      %p124 = scmp.ne.s32.totalorder %s119, %s121
      %p125 = scmp.eq.s32.totalorder %s22, 0
      %p126 = por %p124, %p125
      %p127 = scmp.ne.s32.totalorder %s119, %s121
      %p128 = scmp.eq.s32.totalorder %s27, 1
      %p129 = por %p127, %p128
      %p130 = scmp.ne.s32.totalorder %s121, %s122
      %p131 = scmp.eq.s32.totalorder %s27, 0
      %p132 = por %p130, %p131
      %p133 = scmp.ne.s32.totalorder %s121, %s122
      %p134 = scmp.eq.s32.totalorder %s28, 1
      %p135 = por %p133, %p134
      %p137 = scmp.ne.s32.totalorder %s122, %s136
      %p138 = scmp.eq.s32.totalorder %s28, 0
      %p139 = por %p137, %p138
      %s141 = sadd.s32 %s140, 1
      %p144 = scmp.eq.s32.totalorder %s22, 1
      %p145 = scmp.ne.s32.totalorder %s140, %s142
      %p146 = scmp.eq.s32.totalorder %s22, 0
      %p147 = por %p145, %p146
      %p148 = scmp.ne.s32.totalorder %s140, %s142
      %p149 = scmp.eq.s32.totalorder %s27, 1
      %p150 = por %p148, %p149
      %p151 = scmp.ne.s32.totalorder %s142, %s143
      %p152 = scmp.eq.s32.totalorder %s27, 0
      %p153 = por %p151, %p152
      %p154 = scmp.ne.s32.totalorder %s142, %s143
      %p155 = scmp.eq.s32.totalorder %s28, 1
      %p156 = por %p154, %p155
      %p158 = scmp.ne.s32.totalorder %s143, %s157
      %p159 = scmp.eq.s32.totalorder %s28, 0
      %p160 = por %p158, %p159
      %s162 = sadd.s32 %s161, 1
      %p165 = scmp.eq.s32.totalorder %s22, 1
      %p166 = scmp.ne.s32.totalorder %s161, %s163
      %p167 = scmp.eq.s32.totalorder %s22, 0
      %p168 = por %p166, %p167
      %p169 = scmp.ne.s32.totalorder %s161, %s163
      %p170 = scmp.eq.s32.totalorder %s27, 1
      %p171 = por %p169, %p170
      %p172 = scmp.ne.s32.totalorder %s163, %s164
      %p173 = scmp.eq.s32.totalorder %s27, 0
      %p174 = por %p172, %p173
      %p175 = scmp.ne.s32.totalorder %s163, %s164
      %p176 = scmp.eq.s32.totalorder %s28, 1
      %p177 = por %p175, %p176
      %p179 = scmp.ne.s32.totalorder %s164, %s178
      %p180 = scmp.eq.s32.totalorder %s28, 0
      %p181 = por %p179, %p180
      %s183 = sadd.s32 %s182, 1
      %p186 = scmp.eq.s32.totalorder %s22, 1
      %p187 = scmp.ne.s32.totalorder %s182, %s184
      %p188 = scmp.eq.s32.totalorder %s22, 0
      %p189 = por %p187, %p188
      %p190 = scmp.ne.s32.totalorder %s182, %s184
      %p191 = scmp.eq.s32.totalorder %s27, 1
      %p192 = por %p190, %p191
      %p193 = scmp.ne.s32.totalorder %s184, %s185
      %p194 = scmp.eq.s32.totalorder %s27, 0
      %p195 = por %p193, %p194
      %p196 = scmp.ne.s32.totalorder %s184, %s185
      %p197 = scmp.eq.s32.totalorder %s28, 1
      %p198 = por %p196, %p197
      %p200 = scmp.ne.s32.totalorder %s185, %s199
      %p201 = scmp.eq.s32.totalorder %s28, 0
      %p202 = por %p200, %p201
      %s204 = sadd.s32 %s203, 1
      %p207 = scmp.eq.s32.totalorder %s22, 1
      %p208 = scmp.ne.s32.totalorder %s203, %s205
      %p209 = scmp.eq.s32.totalorder %s22, 0
      %p210 = por %p208, %p209
      %p211 = scmp.ne.s32.totalorder %s203, %s205
      %p212 = scmp.eq.s32.totalorder %s27, 1
      %p213 = por %p211, %p212
      %p214 = scmp.ne.s32.totalorder %s205, %s206
      %p215 = scmp.eq.s32.totalorder %s27, 0
      %p216 = por %p214, %p215
      %p217 = scmp.ne.s32.totalorder %s205, %s206
      %p218 = scmp.eq.s32.totalorder %s28, 1
      %p219 = por %p217, %p218
      %p221 = scmp.ne.s32.totalorder %s206, %s220
      %p222 = scmp.eq.s32.totalorder %s28, 0
      %p223 = por %p221, %p222
      %s225 = sadd.s32 %s224, 1
      %p228 = scmp.eq.s32.totalorder %s22, 1
      %p229 = scmp.ne.s32.totalorder %s224, %s226
      %p230 = scmp.eq.s32.totalorder %s22, 0
      %p231 = por %p229, %p230
      %p232 = scmp.ne.s32.totalorder %s224, %s226
      %p233 = scmp.eq.s32.totalorder %s27, 1
      %p234 = por %p232, %p233
      %p235 = scmp.ne.s32.totalorder %s226, %s227
      %p236 = scmp.eq.s32.totalorder %s27, 0
      %p237 = por %p235, %p236
      %p238 = scmp.ne.s32.totalorder %s226, %s227
      %p239 = scmp.eq.s32.totalorder %s28, 1
      %p240 = por %p238, %p239
      %p242 = scmp.ne.s32.totalorder %s227, %s241
      %p243 = scmp.eq.s32.totalorder %s28, 0
      %p244 = por %p242, %p243
      %s246 = sadd.s32 %s245, 1
      %p249 = scmp.eq.s32.totalorder %s22, 1
      %p250 = scmp.ne.s32.totalorder %s245, %s247
      %p251 = scmp.eq.s32.totalorder %s22, 0
      %p252 = por %p250, %p251
      %p253 = scmp.ne.s32.totalorder %s245, %s247
      %p254 = scmp.eq.s32.totalorder %s27, 1
      %p255 = por %p253, %p254
      %p256 = scmp.ne.s32.totalorder %s247, %s248
      %p257 = scmp.eq.s32.totalorder %s27, 0
      %p258 = por %p256, %p257
      %p259 = scmp.ne.s32.totalorder %s247, %s248
      %p260 = scmp.eq.s32.totalorder %s28, 1
      %p261 = por %p259, %p260
      %p263 = scmp.ne.s32.totalorder %s248, %s262
      %p264 = scmp.eq.s32.totalorder %s28, 0
      %p265 = por %p263, %p264
      %s267 = sadd.s32 %s266, 1
      %p270 = scmp.eq.s32.totalorder %s22, 1
      %p271 = scmp.ne.s32.totalorder %s266, %s268
      %p272 = scmp.eq.s32.totalorder %s22, 0
      %p273 = por %p271, %p272
      %p274 = scmp.ne.s32.totalorder %s266, %s268
      %p275 = scmp.eq.s32.totalorder %s27, 1
      %p276 = por %p274, %p275
      %p277 = scmp.ne.s32.totalorder %s268, %s269
      %p278 = scmp.eq.s32.totalorder %s27, 0
      %p279 = por %p277, %p278
      %p280 = scmp.ne.s32.totalorder %s268, %s269
      %p281 = scmp.eq.s32.totalorder %s28, 1
      %p282 = por %p280, %p281
      %p284 = scmp.ne.s32.totalorder %s269, %s283
      %p285 = scmp.eq.s32.totalorder %s28, 0
      %p286 = por %p284, %p285
      %s287 = ssub.s32 %s22, %s29
      %p288 = scmp.eq.s32.totalorder %s287, 0
      %s290 = sadd.s32 %s289, 1
      %s291 = scalar_select %p288, %s289, %s290
      %p294 = pneg %p288
      %p295 = scmp.eq.s32.totalorder %s22, 1
      %p296 = por %p294, %p295
      %p297 = scmp.ne.s32.totalorder %s289, %s292
      %p298 = scmp.eq.s32.totalorder %s22, 0
      %p299 = por %p297, %p298
      %p300 = scmp.ne.s32.totalorder %s289, %s292
      %p301 = scmp.eq.s32.totalorder %s27, 1
      %p302 = por %p300, %p301
      %p303 = scmp.ne.s32.totalorder %s292, %s293
      %p304 = scmp.eq.s32.totalorder %s27, 0
      %p305 = por %p303, %p304
      %p306 = scmp.ne.s32.totalorder %s292, %s293
      %p307 = scmp.eq.s32.totalorder %s28, 1
      %p308 = por %p306, %p307
      %p310 = scmp.ne.s32.totalorder %s293, %s309
      %p311 = scmp.eq.s32.totalorder %s28, 0
      %p312 = por %p310, %p311
      %s313 = ssub.s32 %s22, %s29
      %p314 = scmp.eq.s32.totalorder %s313, 0
      %s316 = sadd.s32 %s315, 1
      %s317 = scalar_select %p314, %s315, %s316
      %p320 = pneg %p314
      %p321 = scmp.eq.s32.totalorder %s22, 1
      %p322 = por %p320, %p321
      %p323 = scmp.ne.s32.totalorder %s315, %s318
      %p324 = scmp.eq.s32.totalorder %s22, 0
      %p325 = por %p323, %p324
      %p326 = scmp.ne.s32.totalorder %s315, %s318
      %p327 = scmp.eq.s32.totalorder %s27, 1
      %p328 = por %p326, %p327
      %p329 = scmp.ne.s32.totalorder %s318, %s319
      %p330 = scmp.eq.s32.totalorder %s27, 0
      %p331 = por %p329, %p330
      %p332 = scmp.ne.s32.totalorder %s318, %s319
      %p333 = scmp.eq.s32.totalorder %s28, 1
      %p334 = por %p332, %p333
      %p336 = scmp.ne.s32.totalorder %s319, %s335
      %p337 = scmp.eq.s32.totalorder %s28, 0
      %p338 = por %p336, %p337
      %p339 = scmp.le.s32.totalorder 1, %s22
      %p340 = scmp.lt.s32.totalorder %s22, 3
      %p341 = pnand %p339, %p340
      %p342 = pneg %p341
      // Predicated region
      $region9: #{tpu_custom_call.1} parent=5 // pred_check
        _
      $region10: #{tpu_custom_call.1} parent=5 // pred_check_branch
        %344 = sbr.rel (%p341) target = $region12
      $region11: #{tpu_custom_call.1} parent=5 // pred_region
        %s345 = ssub.s32 %s22, 1
        // Predicated region
        $region13: #{tpu_custom_call.1} parent=11 // pred_check
          %p346 = pneg %p69
        $region14: #{tpu_custom_call.1} parent=11 // pred_check_branch
          %348 = sbr.rel (%p346) target = $region16
        $region15: #{tpu_custom_call.1} parent=11 // pred_region
          _
        $region16: #{tpu_custom_call.1} parent=11 // pred_fallthru
          _
        // Predicated region
        $region17: #{tpu_custom_call.1} parent=11 // pred_check
          %p349 = pneg %p90
        $region18: #{tpu_custom_call.1} parent=11 // pred_check_branch
          %351 = sbr.rel (%p349) target = $region20
        $region19: #{tpu_custom_call.1} parent=11 // pred_region
          _
        $region20: #{tpu_custom_call.1} parent=11 // pred_fallthru
          _
        // Predicated region
        $region21: #{tpu_custom_call.1} parent=11 // pred_check
          %p352 = pneg %p111
        $region22: #{tpu_custom_call.1} parent=11 // pred_check_branch
          %354 = sbr.rel (%p352) target = $region24
        $region23: #{tpu_custom_call.1} parent=11 // pred_region
          _
        $region24: #{tpu_custom_call.1} parent=11 // pred_fallthru
          _
        // Predicated region
        $region25: #{tpu_custom_call.1} parent=11 // pred_check
          %p355 = pneg %p132
        $region26: #{tpu_custom_call.1} parent=11 // pred_check_branch
          %357 = sbr.rel (%p355) target = $region28
        $region27: #{tpu_custom_call.1} parent=11 // pred_region
          _
        $region28: #{tpu_custom_call.1} parent=11 // pred_fallthru
          _
        // Predicated region
        $region29: #{tpu_custom_call.1} parent=11 // pred_check
          %p358 = pneg %p153
        $region30: #{tpu_custom_call.1} parent=11 // pred_check_branch
          %360 = sbr.rel (%p358) target = $region32
        $region31: #{tpu_custom_call.1} parent=11 // pred_region
          _
        $region32: #{tpu_custom_call.1} parent=11 // pred_fallthru
          _
        // Predicated region
        $region33: #{tpu_custom_call.1} parent=11 // pred_check
          %p361 = pneg %p174
        $region34: #{tpu_custom_call.1} parent=11 // pred_check_branch
          %363 = sbr.rel (%p361) target = $region36
        $region35: #{tpu_custom_call.1} parent=11 // pred_region
          _
        $region36: #{tpu_custom_call.1} parent=11 // pred_fallthru
          _
        // Predicated region
        $region37: #{tpu_custom_call.1} parent=11 // pred_check
          %p364 = pneg %p195
        $region38: #{tpu_custom_call.1} parent=11 // pred_check_branch
          %366 = sbr.rel (%p364) target = $region40
        $region39: #{tpu_custom_call.1} parent=11 // pred_region
          _
        $region40: #{tpu_custom_call.1} parent=11 // pred_fallthru
          _
        // Predicated region
        $region41: #{tpu_custom_call.1} parent=11 // pred_check
          %p367 = pneg %p216
        $region42: #{tpu_custom_call.1} parent=11 // pred_check_branch
          %369 = sbr.rel (%p367) target = $region44
        $region43: #{tpu_custom_call.1} parent=11 // pred_region
          _
        $region44: #{tpu_custom_call.1} parent=11 // pred_fallthru
          _
        // Predicated region
        $region45: #{tpu_custom_call.1} parent=11 // pred_check
          %p370 = pneg %p237
        $region46: #{tpu_custom_call.1} parent=11 // pred_check_branch
          %372 = sbr.rel (%p370) target = $region48
        $region47: #{tpu_custom_call.1} parent=11 // pred_region
          _
        $region48: #{tpu_custom_call.1} parent=11 // pred_fallthru
          _
        // Predicated region
        $region49: #{tpu_custom_call.1} parent=11 // pred_check
          %p373 = pneg %p258
        $region50: #{tpu_custom_call.1} parent=11 // pred_check_branch
          %375 = sbr.rel (%p373) target = $region52
        $region51: #{tpu_custom_call.1} parent=11 // pred_region
          _
        $region52: #{tpu_custom_call.1} parent=11 // pred_fallthru
          _
        // Predicated region
        $region53: #{tpu_custom_call.1} parent=11 // pred_check
          %p376 = pneg %p279
        $region54: #{tpu_custom_call.1} parent=11 // pred_check_branch
          %378 = sbr.rel (%p376) target = $region56
        $region55: #{tpu_custom_call.1} parent=11 // pred_region
          _
        $region56: #{tpu_custom_call.1} parent=11 // pred_fallthru
          _
      $region12: #{tpu_custom_call.1} parent=5 // pred_fallthru
        _
      %p379 = scmp.lt.s32.totalorder %s22, 2
      // Predicated region
      $region57: #{tpu_custom_call.1} parent=5 // pred_check
        %p380 = pneg %p379
      $region58: #{tpu_custom_call.1} parent=5 // pred_check_branch
        %382 = sbr.rel (%p380) target = $region60
      $region59: #{tpu_custom_call.1} parent=5 // pred_region
        // Predicated region
        $region61: #{tpu_custom_call.1} parent=59 // pred_check
          %p383 = pneg %p42
        $region62: #{tpu_custom_call.1} parent=59 // pred_check_branch
          %385 = sbr.rel (%p383) target = $region64
        $region63: #{tpu_custom_call.1} parent=59 // pred_region
          %s386 = sand.u32 %s32, 1
          %s387 = sand.u32 %s32, 1
          %s388 = smul.addr %s387, 48
          %s389 = scalar_lea.vmem [#allocation2], %s388
          %s390 = smul.u32 2, %s22
          %s391 = smul.addr %s390, 8
          %s392 = scalar_lea.vmem %s0, %s391
          // Predicated region
          $region65: #{tpu_custom_call.1} parent=63 // pred_check
            _
          $region66: #{tpu_custom_call.1} parent=63 // pred_check_branch
            %394 = sbr.rel (0) target = $region68
          $region67: #{tpu_custom_call.1} parent=63 // pred_region
            // Predicated region
            $region69: #{tpu_custom_call.1} parent=67 // pred_check
              _
            $region70: #{tpu_custom_call.1} parent=67 // pred_check_branch
              %396 = sbr.rel (0) target = $region72
            $region71: #{tpu_custom_call.1} parent=67 // pred_region
              loop: start=0, step=1, limit=1
              $region73: #{tpu_custom_call.1} parent=71 // loop_pre_header
                _
              $region74: #{tpu_custom_call.1} parent=71 // loop_header
                %s398 = sphi 0, %s402
                %p399 = scmp.ge.s32.totalorder %s398, 1
                %s403 = sphi %s392, %s392
                %s404 = sphi %s389, %s389
              $region75: #{tpu_custom_call.1} parent=71 // loop_header_branch
                %401 = sbr.rel (%p399) target = $region79
              $region76: #{tpu_custom_call.1} parent=71 // loop_body
                %v405 = vld [vmem:[%s403] sm:$0xff]
                %406 = vst [vmem:[%s404] sm:$0xff] %v405
                %v407 = vld [vmem:[%s403 + $0x8] sm:$0xff]
                %408 = vst [vmem:[%s404 + $0x8] sm:$0xff] %v407
                %v409 = vld [vmem:[%s403 + $0x20] sm:$0xff]
                %410 = vst [vmem:[%s404 + $0x10] sm:$0xff] %v409
                %v411 = vld [vmem:[%s403 + $0x28] sm:$0xff]
                %412 = vst [vmem:[%s404 + $0x18] sm:$0xff] %v411
                %v413 = vld [vmem:[%s403 + $0x40] sm:$0xff]
                %414 = vst [vmem:[%s404 + $0x20] sm:$0xff] %v413
                %v415 = vld [vmem:[%s403 + $0x48] sm:$0xff]
                %416 = vst [vmem:[%s404 + $0x28] sm:$0xff] %v415
              $region77: #{tpu_custom_call.1} parent=71 // loop_footer
                %s402 = sadd.s32 1, %s398
              $region78: #{tpu_custom_call.1} parent=71 // loop_footer_branch
                %397 = sbr.rel target = $region74
              $region79: #{tpu_custom_call.1} parent=71 // loop_exit
                _
            $region72: #{tpu_custom_call.1} parent=67 // pred_fallthru
              _
            // Predicated region
            $region80: #{tpu_custom_call.1} parent=67 // pred_check
              _
            $region81: #{tpu_custom_call.1} parent=67 // pred_check_branch
              %418 = sbr.rel target = $region83
            $region82: #{tpu_custom_call.1} parent=67 // pred_region
              _
            $region83: #{tpu_custom_call.1} parent=67 // pred_fallthru
              _
          $region68: #{tpu_custom_call.1} parent=63 // pred_fallthru
            _
          %419 = vnop
        $region64: #{tpu_custom_call.1} parent=59 // pred_fallthru
          _
        // Predicated region
        $region84: #{tpu_custom_call.1} parent=59 // pred_check
          %p420 = pneg %p299
        $region85: #{tpu_custom_call.1} parent=59 // pred_check_branch
          %422 = sbr.rel (%p420) target = $region87
        $region86: #{tpu_custom_call.1} parent=59 // pred_region
          %s423 = smul.u32 2, %s22
          %p424 = scmp.lt.s32.totalorder %s423, 3
          %s425 = scalar_select %p424, %s423, 3
          %s426 = smul.addr %s425, 8
          %s427 = scalar_lea.vmem %s12, %s426
          %s428 = smul.u32 2, %s22
        $region87: #{tpu_custom_call.1} parent=59 // pred_fallthru
          _
      $region60: #{tpu_custom_call.1} parent=5 // pred_fallthru
        _
      %p429 = scmp.le.s32.totalorder 1, %s22
      %p430 = scmp.lt.s32.totalorder %s22, 3
      %p431 = pnand %p429, %p430
      %p432 = pneg %p431
      // Predicated region
      $region88: #{tpu_custom_call.1} parent=5 // pred_check
        _
      $region89: #{tpu_custom_call.1} parent=5 // pred_check_branch
        %434 = sbr.rel (%p431) target = $region91
      $region90: #{tpu_custom_call.1} parent=5 // pred_region
        %s435 = ssub.s32 %s22, 1
        %s436 = sand.u32 %s35, 1
        %s437 = sand.u32 %s35, 1
        %s438 = smul.addr %s437, 48
        %s439 = scalar_lea.vmem [#allocation2], %s438
        // Predicated region
        $region92: #{tpu_custom_call.1} parent=90 // pred_check
          %p440 = pneg %p48
        $region93: #{tpu_custom_call.1} parent=90 // pred_check_branch
          %442 = sbr.rel (%p440) target = $region95
        $region94: #{tpu_custom_call.1} parent=90 // pred_region
          _
        $region95: #{tpu_custom_call.1} parent=90 // pred_fallthru
          _
        %s443 = sand.u32 %s35, 1
        %s444 = sand.u32 %s35, 1
        %s445 = smul.addr %s444, 48
        %s446 = scalar_lea.vmem [#allocation2], %s445
        %p447 = pneg %p48
        %p448 = pneg %p45
        %p449 = pneg %p69
        %p450 = pneg %p66
        %p451 = pneg %p90
        %p452 = pneg %p87
        %p453 = pneg %p111
        %p454 = pneg %p108
        %p455 = pneg %p132
        %p456 = pneg %p129
        %p457 = pneg %p153
        %p458 = pneg %p150
        %p459 = pneg %p174
        %p460 = pneg %p171
        %p461 = pneg %p195
        %p462 = pneg %p192
        %p463 = pneg %p216
        %p464 = pneg %p213
        %p465 = pneg %p237
        %p466 = pneg %p234
        %p467 = pneg %p258
        %p468 = pneg %p255
        %p469 = pneg %p279
        %p470 = pneg %p276
        %s471 = smul.u32 2, %s27
        %p472 = scmp.lt.s32.totalorder %s471, 3
        %s473 = scalar_select %p472, %s471, 3
        %s474 = smul.addr %s473, 8
        %s475 = scalar_lea.vmem %s12, %s474
        %p476 = pneg %p305
        %p477 = pneg %p302
        %p478 = pneg %p331
        %p479 = pneg %p328
        %s480 = sand.u32 %s318, 1
        %s481 = scalar_lea.sflag [#allocation4], %s480
        %s482 = sand.u32 %s318, 1
        %s483 = smul.addr %s482, 16
        %s484 = scalar_lea.vmem [#allocation3], %s483
        %s485 = smul.u32 2, %s27
        %s486 = smul.u32 2, %s27
        %p487 = scmp.lt.s32.totalorder %s486, 3
        %s488 = scalar_select %p487, %s486, 3
        %s489 = smul.addr %s488, 8
        %s490 = scalar_lea.vmem %s12, %s489
        %s491 = smul.u32 2, %s27
        %s492 = smul.u32 2, %s27
        %v494 = vld [vmem:[%s439] sm:$0xff]
        %v495 = vld [vmem:[%s439 + $0x8] sm:$0xff]
        %v496 = vld [vmem:[%s439 + $0x10] sm:$0xff]
        %v497 = vld [vmem:[%s439 + $0x18] sm:$0xff]
        %v498 = vld [vmem:[%s439 + $0x20] sm:$0xff]
        %v499 = vld [vmem:[%s439 + $0x28] sm:$0xff]
        %v500 = vpack.c.bf16 %v496, %v494
        %v501 = vpack.c.bf16 %v497, %v495
        %v502 = vpack.c.bf16 %v498, %v498
        %v503 = vpack.c.bf16 %v499, %v499
        %v504 = vld [vmem:[%s1] sm:$0xf]
        %v505 = vld [vmem:[%s1 + $0x4] sm:$0xf]
        %v506 = vld [vmem:[%s1 + $0x8] sm:$0xf]
        %v507 = vld [vmem:[%s1 + $0xc] sm:$0xf]
        %v508 = vld [vmem:[%s2] sm:$0xff]
        %v509 = vld [vmem:[%s2 + $0x8] sm:$0xff]
        %v510 = vld [vmem:[%s2 + $0x10] sm:$0xff]
        %v511 = vld [vmem:[%s2 + $0x18] sm:$0xff]
        %513 = vset.pattern.permute.xlu0 0
        %514 = vperm.xlu0 %513, %v508
        %v515 = vpop.permute.xlu0 %514
        %518 = vset.pattern.permute.xlu0 0
        %519 = vperm.xlu0 %518, %v509
        %v520 = vpop.permute.xlu0 %519
        %523 = vset.pattern.permute.xlu0 0
        %524 = vperm.xlu0 %523, %v510
        %v525 = vpop.permute.xlu0 %524
        %528 = vset.pattern.permute.xlu0 0
        %529 = vperm.xlu0 %528, %v511
        %v530 = vpop.permute.xlu0 %529
        %v536 = vunpack.c.l.b16 %v504
        %v537 = vunpack.c.l.b16 %v505
        %v538 = vunpack.c.l.b16 %v506
        %v539 = vunpack.c.l.b16 %v507
        %v540 = vpack.c.b16 %v537, %v536
        %v541 = vpack.c.b16 %v539, %v538
        %vm542 = vcmask 195584
        %v544 = vsel %vm542, %v540, 0
        %v547 = vsel %vm542, %v541, 0
        %vm549 = vcmask 1043456
        %v551 = vsel %vm549, %v502, 0
        %v554 = vsel %vm549, %v503, 0
        %556 = vmatprep.subr.bf16.mxu0 %v501
        %557 = vmatpush1.bf16.msra.mxu0 %v500
        %558 = vmatprep.subr.bf16.mxu0 %v554
        %559 = vmatpush1.bf16.msra.mxu0 %v551
        %560 = vmatprep.subr.bf16.mxu0 0
        %561 = vmatpush1.bf16.msra.mxu0 0
        %562 = vmatprep.subr.bf16.mxu0 0
        %563 = vmatpush1.bf16.msra.mxu0 0
        %564 = vmatprep.subr.bf16.mxu0 0
        %565 = vmatpush1.bf16.msra.mxu0 0
        %566 = vmatprep.subr.bf16.mxu0 0
        %567 = vmatpush1.bf16.msra.mxu0 0
        %568 = vmatprep.subr.bf16.mxu0 0
        %569 = vmatpush1.bf16.msra.mxu0 0
        %570 = vmatprep.subr.bf16.mxu0 0
        %571 = vmatpush1.bf16.msra.mxu0 0
        %572 = vmatprep.subr.bf16.mxu0 0
        %573 = vmatpush1.bf16.msra.mxu0 0
        %574 = vmatprep.subr.bf16.mxu0 0
        %575 = vmatpush1.bf16.msra.mxu0 0
        %576 = vmatprep.subr.bf16.mxu0 0
        %577 = vmatpush1.bf16.msra.mxu0 0
        %578 = vmatprep.subr.bf16.mxu0 0
        %579 = vmatpush1.bf16.msra.mxu0 0
        %580 = vmatprep.subr.bf16.mxu0 0
        %581 = vmatpush1.bf16.msra.mxu0 0
        %582 = vmatprep.subr.bf16.mxu0 0
        %583 = vmatpush1.bf16.msra.mxu0 0
        %584 = vmatprep.subr.bf16.mxu0 0
        %585 = vmatpush1.bf16.msra.mxu0 0
        %586 = vmatprep.subr.bf16.mxu0 0
        %587 = vmatpush1.bf16.msra.mxu0 0
        %588 = vmatprep.mubr.bf16.mxu0 0
        %589 = vmatmul.mubr.bf16.gmra.mrb[0].mxu0 %v544
        %v590 = vpop.f32.mrb[0].mxu0
        %v591 = vadd.f32 %v515, %v590
        %v592 = vpop.f32.mrb[0].mxu0
        %v593 = vadd.f32 %v515, %v592
        %v594 = vpop.f32.mrb[0].mxu0
        %v595 = vadd.f32 %v520, %v594
        %v596 = vpop.f32.mrb[0].mxu0
        %v597 = vadd.f32 %v520, %v596
        %598 = vmatprep.mubr.bf16.mxu0 0
        %599 = vmatmul.mubr.bf16.gmra.mrb[0].mxu0 %v547
        %v600 = vpop.f32.mrb[0].mxu0
        %v601 = vadd.f32 %v525, %v600
        %v602 = vpop.f32.mrb[0].mxu0
        %v603 = vadd.f32 %v525, %v602
        %v604 = vpop.f32.mrb[0].mxu0
        %v605 = vadd.f32 %v530, %v604
        %v606 = vpop.f32.mrb[0].mxu0
        %v607 = vadd.f32 %v530, %v606
        %608 = vdwg.mxu0
        %vm609 = vcmp.gt.f32.partialorder %v591, 0.0
        %vm610 = vcmp.gt.f32.partialorder %v593, 0.0
        %vm611 = vcmp.gt.f32.partialorder %v595, 0.0
        %vm612 = vcmp.gt.f32.partialorder %v597, 0.0
        %vm613 = vcmp.gt.f32.partialorder %v601, 0.0
        %vm614 = vcmp.gt.f32.partialorder %v603, 0.0
        %vm615 = vcmp.gt.f32.partialorder %v605, 0.0
        %vm616 = vcmp.gt.f32.partialorder %v607, 0.0
        %v617 = vmin.f32 %v591, 0.0
        %v618 = vmin.f32 %v593, 0.0
        %v619 = vmin.f32 %v595, 0.0
        %v620 = vmin.f32 %v597, 0.0
        %v621 = vmin.f32 %v601, 0.0
        %v622 = vmin.f32 %v603, 0.0
        %v623 = vmin.f32 %v605, 0.0
        %v624 = vmin.f32 %v607, 0.0
        %v625 = vmul.f32 %v617, 1.442695
        %v626 = vpow.pop %v625
        %v627 = vmul.f32 %v618, 1.442695
        %v628 = vpow.pop %v627
        %v629 = vmul.f32 %v619, 1.442695
        %v630 = vpow.pop %v629
        %v631 = vmul.f32 %v620, 1.442695
        %v632 = vpow.pop %v631
        %v633 = vmul.f32 %v621, 1.442695
        %v634 = vpow.pop %v633
        %v635 = vmul.f32 %v622, 1.442695
        %v636 = vpow.pop %v635
        %v637 = vmul.f32 %v623, 1.442695
        %v638 = vpow.pop %v637
        %v639 = vmul.f32 %v624, 1.442695
        %v640 = vpow.pop %v639
        %v641 = vsub.f32 %v626, 1.0
        %v642 = vsub.f32 %v628, 1.0
        %v643 = vsub.f32 %v630, 1.0
        %v644 = vsub.f32 %v632, 1.0
        %v645 = vsub.f32 %v634, 1.0
        %v646 = vsub.f32 %v636, 1.0
        %v647 = vsub.f32 %v638, 1.0
        %v648 = vsub.f32 %v640, 1.0
        %v649 = vsel %vm609, %v591, %v641
        %v650 = vsel %vm610, %v593, %v642
        %v651 = vsel %vm611, %v595, %v643
        %v652 = vsel %vm612, %v597, %v644
        %v653 = vsel %vm613, %v601, %v645
        %v654 = vsel %vm614, %v603, %v646
        %v655 = vsel %vm615, %v605, %v647
        %v656 = vsel %vm616, %v607, %v648
        %v657 = vld [vmem:[%s3] sm:$0xff]
        %v658 = vld [vmem:[%s3 + $0x8] sm:$0xff]
        %v659 = vld [vmem:[%s3 + $0x10] sm:$0xff]
        %v660 = vld [vmem:[%s3 + $0x18] sm:$0xff]
        %v661 = vld [vmem:[%s4] sm:$0xff]
        %v662 = vld [vmem:[%s4 + $0x8] sm:$0xff]
        %v663 = vld [vmem:[%s4 + $0x10] sm:$0xff]
        %v664 = vld [vmem:[%s4 + $0x18] sm:$0xff]
        %v665 = vadd.f32 %v649, %v651
        %v666 = vadd.f32 %v665, %v653
        %v667 = vadd.f32 %v666, %v655
        %v668 = vrot.slane %v667, 4
        %v669 = vadd.f32 %v667, %v668
        %v670 = vrot.slane %v669, 2
        %v671 = vadd.f32 %v669, %v670
        %v672 = vrot.slane %v671, 1
        %v673 = vadd.f32 %v671, %v672
        %v674 = vadd.f32 %v650, %v652
        %v675 = vadd.f32 %v674, %v654
        %v676 = vadd.f32 %v675, %v656
        %v677 = vrot.slane %v676, 4
        %v678 = vadd.f32 %v676, %v677
        %v679 = vrot.slane %v678, 2
        %v680 = vadd.f32 %v678, %v679
        %v681 = vrot.slane %v680, 1
        %v682 = vadd.f32 %v680, %v681
        %v683 = vrcp.pop 32.0
        %v684 = vmul.f32 %v673, %v683
        %v685 = vmul.f32 %v682, %v683
        %v686 = vmul.f32 %v649, %v649
        %v687 = vmul.f32 %v650, %v650
        %v688 = vmul.f32 %v651, %v651
        %v689 = vmul.f32 %v652, %v652
        %v690 = vmul.f32 %v653, %v653
        %v691 = vmul.f32 %v654, %v654
        %v692 = vmul.f32 %v655, %v655
        %v693 = vmul.f32 %v656, %v656
        %v694 = vadd.f32 %v686, %v688
        %v695 = vadd.f32 %v694, %v690
        %v696 = vadd.f32 %v695, %v692
        %v697 = vrot.slane %v696, 4
        %v698 = vadd.f32 %v696, %v697
        %v699 = vrot.slane %v698, 2
        %v700 = vadd.f32 %v698, %v699
        %v701 = vrot.slane %v700, 1
        %v702 = vadd.f32 %v700, %v701
        %v703 = vadd.f32 %v687, %v689
        %v704 = vadd.f32 %v703, %v691
        %v705 = vadd.f32 %v704, %v693
        %v706 = vrot.slane %v705, 4
        %v707 = vadd.f32 %v705, %v706
        %v708 = vrot.slane %v707, 2
        %v709 = vadd.f32 %v707, %v708
        %v710 = vrot.slane %v709, 1
        %v711 = vadd.f32 %v709, %v710
        %v712 = vmul.f32 %v702, %v683
        %v713 = vmul.f32 %v711, %v683
        %v714 = vmul.f32 %v684, %v684
        %v715 = vmul.f32 %v685, %v685
        %v716 = vsub.f32 %v712, %v714
        %v717 = vsub.f32 %v713, %v715
        %v718 = vmax.f32 %v716, 0.0
        %v719 = vmax.f32 %v717, 0.0
        %v720 = vadd.f32 %v718, 1e-05
        %v721 = vadd.f32 %v719, 1e-05
        %v722 = vrsqrt.pop %v720
        %v723 = vrsqrt.pop %v721
        %v724 = vsub.f32 %v649, %v684
        %v725 = vsub.f32 %v650, %v685
        %v726 = vsub.f32 %v651, %v684
        %v727 = vsub.f32 %v652, %v685
        %v728 = vsub.f32 %v653, %v684
        %v729 = vsub.f32 %v654, %v685
        %v730 = vsub.f32 %v655, %v684
        %v731 = vsub.f32 %v656, %v685
        %v732 = vmul.f32 %v724, %v722
        %v733 = vmul.f32 %v725, %v723
        %v734 = vmul.f32 %v726, %v722
        %v735 = vmul.f32 %v727, %v723
        %v736 = vmul.f32 %v728, %v722
        %v737 = vmul.f32 %v729, %v723
        %v738 = vmul.f32 %v730, %v722
        %v739 = vmul.f32 %v731, %v723
        %741 = vset.pattern.permute.xlu0 0
        %742 = vperm.xlu0 %741, %v657
        %v743 = vpop.permute.xlu0 %742
        %746 = vset.pattern.permute.xlu0 0
        %747 = vperm.xlu0 %746, %v658
        %v748 = vpop.permute.xlu0 %747
        %751 = vset.pattern.permute.xlu0 0
        %752 = vperm.xlu0 %751, %v659
        %v753 = vpop.permute.xlu0 %752
        %756 = vset.pattern.permute.xlu0 0
        %757 = vperm.xlu0 %756, %v660
        %v758 = vpop.permute.xlu0 %757
        %v760 = vmul.f32 %v732, %v743
        %v761 = vmul.f32 %v733, %v743
        %v762 = vmul.f32 %v734, %v748
        %v763 = vmul.f32 %v735, %v748
        %v764 = vmul.f32 %v736, %v753
        %v765 = vmul.f32 %v737, %v753
        %v766 = vmul.f32 %v738, %v758
        %v767 = vmul.f32 %v739, %v758
        %769 = vset.pattern.permute.xlu0 0
        %770 = vperm.xlu0 %769, %v661
        %v771 = vpop.permute.xlu0 %770
        %774 = vset.pattern.permute.xlu0 0
        %775 = vperm.xlu0 %774, %v662
        %v776 = vpop.permute.xlu0 %775
        %779 = vset.pattern.permute.xlu0 0
        %780 = vperm.xlu0 %779, %v663
        %v781 = vpop.permute.xlu0 %780
        %784 = vset.pattern.permute.xlu0 0
        %785 = vperm.xlu0 %784, %v664
        %v786 = vpop.permute.xlu0 %785
        %v788 = vadd.f32 %v760, %v771
        %v789 = vadd.f32 %v761, %v771
        %v790 = vadd.f32 %v762, %v776
        %v791 = vadd.f32 %v763, %v776
        %v792 = vadd.f32 %v764, %v781
        %v793 = vadd.f32 %v765, %v781
        %v794 = vadd.f32 %v766, %v786
        %v795 = vadd.f32 %v767, %v786
        %v796 = vld [vmem:[%s5] sm:$0xf]
        %v797 = vld [vmem:[%s5 + $0x4] sm:$0xf]
        %v798 = vld [vmem:[%s5 + $0x8] sm:$0xf]
        %v799 = vld [vmem:[%s5 + $0xc] sm:$0xf]
        %v800 = vpack.c.bf16 %v790, %v788
        %v801 = vpack.c.bf16 %v791, %v789
        %v802 = vpack.c.bf16 %v794, %v792
        %v803 = vpack.c.bf16 %v795, %v793
        %v804 = vld [vmem:[%s6] sm:$0xff]
        %v805 = vld [vmem:[%s6 + $0x8] sm:$0xff]
        %v806 = vld [vmem:[%s6 + $0x10] sm:$0xff]
        %v807 = vld [vmem:[%s6 + $0x18] sm:$0xff]
        %809 = vset.pattern.permute.xlu0 0
        %810 = vperm.xlu0 %809, %v804
        %v811 = vpop.permute.xlu0 %810
        %814 = vset.pattern.permute.xlu0 0
        %815 = vperm.xlu0 %814, %v805
        %v816 = vpop.permute.xlu0 %815
        %819 = vset.pattern.permute.xlu0 0
        %820 = vperm.xlu0 %819, %v806
        %v821 = vpop.permute.xlu0 %820
        %824 = vset.pattern.permute.xlu0 0
        %825 = vperm.xlu0 %824, %v807
        %v826 = vpop.permute.xlu0 %825
        %v832 = vunpack.c.l.b16 %v796
        %v833 = vunpack.c.l.b16 %v797
        %v834 = vunpack.c.l.b16 %v798
        %v835 = vunpack.c.l.b16 %v799
        %v836 = vpack.c.b16 %v833, %v832
        %v837 = vpack.c.b16 %v835, %v834
        %vm838 = vcmask 261120
        %v840 = vsel %vm838, %v836, 0
        %v843 = vsel %vm838, %v837, 0
        %845 = vmatprep.subr.bf16.mxu0 %v801
        %846 = vmatpush1.bf16.msra.mxu0 %v800
        %847 = vmatprep.subr.bf16.mxu0 %v803
        %848 = vmatpush1.bf16.msra.mxu0 %v802
        %849 = vmatprep.subr.bf16.mxu0 0
        %850 = vmatpush1.bf16.msra.mxu0 0
        %851 = vmatprep.subr.bf16.mxu0 0
        %852 = vmatpush1.bf16.msra.mxu0 0
        %853 = vmatprep.subr.bf16.mxu0 0
        %854 = vmatpush1.bf16.msra.mxu0 0
        %855 = vmatprep.subr.bf16.mxu0 0
        %856 = vmatpush1.bf16.msra.mxu0 0
        %857 = vmatprep.subr.bf16.mxu0 0
        %858 = vmatpush1.bf16.msra.mxu0 0
        %859 = vmatprep.subr.bf16.mxu0 0
        %860 = vmatpush1.bf16.msra.mxu0 0
        %861 = vmatprep.subr.bf16.mxu0 0
        %862 = vmatpush1.bf16.msra.mxu0 0
        %863 = vmatprep.subr.bf16.mxu0 0
        %864 = vmatpush1.bf16.msra.mxu0 0
        %865 = vmatprep.subr.bf16.mxu0 0
        %866 = vmatpush1.bf16.msra.mxu0 0
        %867 = vmatprep.subr.bf16.mxu0 0
        %868 = vmatpush1.bf16.msra.mxu0 0
        %869 = vmatprep.subr.bf16.mxu0 0
        %870 = vmatpush1.bf16.msra.mxu0 0
        %871 = vmatprep.subr.bf16.mxu0 0
        %872 = vmatpush1.bf16.msra.mxu0 0
        %873 = vmatprep.subr.bf16.mxu0 0
        %874 = vmatpush1.bf16.msra.mxu0 0
        %875 = vmatprep.subr.bf16.mxu0 0
        %876 = vmatpush1.bf16.msra.mxu0 0
        %877 = vmatprep.mubr.bf16.mxu0 0
        %878 = vmatmul.mubr.bf16.gmra.mrb[0].mxu0 %v840
        %v879 = vpop.f32.mrb[0].mxu0
        %v880 = vadd.f32 %v811, %v879
        %v881 = vpop.f32.mrb[0].mxu0
        %v882 = vadd.f32 %v811, %v881
        %v883 = vpop.f32.mrb[0].mxu0
        %v884 = vadd.f32 %v816, %v883
        %v885 = vpop.f32.mrb[0].mxu0
        %v886 = vadd.f32 %v816, %v885
        %887 = vmatprep.mubr.bf16.mxu0 0
        %888 = vmatmul.mubr.bf16.gmra.mrb[0].mxu0 %v843
        %v889 = vpop.f32.mrb[0].mxu0
        %v890 = vadd.f32 %v821, %v889
        %v891 = vpop.f32.mrb[0].mxu0
        %v892 = vadd.f32 %v821, %v891
        %v893 = vpop.f32.mrb[0].mxu0
        %v894 = vadd.f32 %v826, %v893
        %v895 = vpop.f32.mrb[0].mxu0
        %v896 = vadd.f32 %v826, %v895
        %897 = vdwg.mxu0
        %vm898 = vcmp.gt.f32.partialorder %v880, 0.0
        %vm899 = vcmp.gt.f32.partialorder %v882, 0.0
        %vm900 = vcmp.gt.f32.partialorder %v884, 0.0
        %vm901 = vcmp.gt.f32.partialorder %v886, 0.0
        %vm902 = vcmp.gt.f32.partialorder %v890, 0.0
        %vm903 = vcmp.gt.f32.partialorder %v892, 0.0
        %vm904 = vcmp.gt.f32.partialorder %v894, 0.0
        %vm905 = vcmp.gt.f32.partialorder %v896, 0.0
        %v906 = vmin.f32 %v880, 0.0
        %v907 = vmin.f32 %v882, 0.0
        %v908 = vmin.f32 %v884, 0.0
        %v909 = vmin.f32 %v886, 0.0
        %v910 = vmin.f32 %v890, 0.0
        %v911 = vmin.f32 %v892, 0.0
        %v912 = vmin.f32 %v894, 0.0
        %v913 = vmin.f32 %v896, 0.0
        %v914 = vmul.f32 %v906, 1.442695
        %v915 = vpow.pop %v914
        %v916 = vmul.f32 %v907, 1.442695
        %v917 = vpow.pop %v916
        %v918 = vmul.f32 %v908, 1.442695
        %v919 = vpow.pop %v918
        %v920 = vmul.f32 %v909, 1.442695
        %v921 = vpow.pop %v920
        %v922 = vmul.f32 %v910, 1.442695
        %v923 = vpow.pop %v922
        %v924 = vmul.f32 %v911, 1.442695
        %v925 = vpow.pop %v924
        %v926 = vmul.f32 %v912, 1.442695
        %v927 = vpow.pop %v926
        %v928 = vmul.f32 %v913, 1.442695
        %v929 = vpow.pop %v928
        %v930 = vsub.f32 %v915, 1.0
        %v931 = vsub.f32 %v917, 1.0
        %v932 = vsub.f32 %v919, 1.0
        %v933 = vsub.f32 %v921, 1.0
        %v934 = vsub.f32 %v923, 1.0
        %v935 = vsub.f32 %v925, 1.0
        %v936 = vsub.f32 %v927, 1.0
        %v937 = vsub.f32 %v929, 1.0
        %v938 = vsel %vm898, %v880, %v930
        %v939 = vsel %vm899, %v882, %v931
        %v940 = vsel %vm900, %v884, %v932
        %v941 = vsel %vm901, %v886, %v933
        %v942 = vsel %vm902, %v890, %v934
        %v943 = vsel %vm903, %v892, %v935
        %v944 = vsel %vm904, %v894, %v936
        %v945 = vsel %vm905, %v896, %v937
        %v946 = vld [vmem:[%s7] sm:$0xff]
        %v947 = vld [vmem:[%s7 + $0x8] sm:$0xff]
        %v948 = vld [vmem:[%s7 + $0x10] sm:$0xff]
        %v949 = vld [vmem:[%s7 + $0x18] sm:$0xff]
        %v950 = vld [vmem:[%s8] sm:$0xff]
        %v951 = vld [vmem:[%s8 + $0x8] sm:$0xff]
        %v952 = vld [vmem:[%s8 + $0x10] sm:$0xff]
        %v953 = vld [vmem:[%s8 + $0x18] sm:$0xff]
        %v954 = vadd.f32 %v938, %v940
        %v955 = vadd.f32 %v954, %v942
        %v956 = vadd.f32 %v955, %v944
        %v957 = vrot.slane %v956, 4
        %v958 = vadd.f32 %v956, %v957
        %v959 = vrot.slane %v958, 2
        %v960 = vadd.f32 %v958, %v959
        %v961 = vrot.slane %v960, 1
        %v962 = vadd.f32 %v960, %v961
        %v963 = vadd.f32 %v939, %v941
        %v964 = vadd.f32 %v963, %v943
        %v965 = vadd.f32 %v964, %v945
        %v966 = vrot.slane %v965, 4
        %v967 = vadd.f32 %v965, %v966
        %v968 = vrot.slane %v967, 2
        %v969 = vadd.f32 %v967, %v968
        %v970 = vrot.slane %v969, 1
        %v971 = vadd.f32 %v969, %v970
        %v972 = vmul.f32 %v962, %v683
        %v973 = vmul.f32 %v971, %v683
        %v974 = vmul.f32 %v938, %v938
        %v975 = vmul.f32 %v939, %v939
        %v976 = vmul.f32 %v940, %v940
        %v977 = vmul.f32 %v941, %v941
        %v978 = vmul.f32 %v942, %v942
        %v979 = vmul.f32 %v943, %v943
        %v980 = vmul.f32 %v944, %v944
        %v981 = vmul.f32 %v945, %v945
        %v982 = vadd.f32 %v974, %v976
        %v983 = vadd.f32 %v982, %v978
        %v984 = vadd.f32 %v983, %v980
        %v985 = vrot.slane %v984, 4
        %v986 = vadd.f32 %v984, %v985
        %v987 = vrot.slane %v986, 2
        %v988 = vadd.f32 %v986, %v987
        %v989 = vrot.slane %v988, 1
        %v990 = vadd.f32 %v988, %v989
        %v991 = vadd.f32 %v975, %v977
        %v992 = vadd.f32 %v991, %v979
        %v993 = vadd.f32 %v992, %v981
        %v994 = vrot.slane %v993, 4
        %v995 = vadd.f32 %v993, %v994
        %v996 = vrot.slane %v995, 2
        %v997 = vadd.f32 %v995, %v996
        %v998 = vrot.slane %v997, 1
        %v999 = vadd.f32 %v997, %v998
        %v1000 = vmul.f32 %v990, %v683
        %v1001 = vmul.f32 %v999, %v683
        %v1002 = vmul.f32 %v972, %v972
        %v1003 = vmul.f32 %v973, %v973
        %v1004 = vsub.f32 %v1000, %v1002
        %v1005 = vsub.f32 %v1001, %v1003
        %v1006 = vmax.f32 %v1004, 0.0
        %v1007 = vmax.f32 %v1005, 0.0
        %v1008 = vadd.f32 %v1006, 1e-05
        %v1009 = vadd.f32 %v1007, 1e-05
        %v1010 = vrsqrt.pop %v1008
        %v1011 = vrsqrt.pop %v1009
        %v1012 = vsub.f32 %v938, %v972
        %v1013 = vsub.f32 %v939, %v973
        %v1014 = vsub.f32 %v940, %v972
        %v1015 = vsub.f32 %v941, %v973
        %v1016 = vsub.f32 %v942, %v972
        %v1017 = vsub.f32 %v943, %v973
        %v1018 = vsub.f32 %v944, %v972
        %v1019 = vsub.f32 %v945, %v973
        %v1020 = vmul.f32 %v1012, %v1010
        %v1021 = vmul.f32 %v1013, %v1011
        %v1022 = vmul.f32 %v1014, %v1010
        %v1023 = vmul.f32 %v1015, %v1011
        %v1024 = vmul.f32 %v1016, %v1010
        %v1025 = vmul.f32 %v1017, %v1011
        %v1026 = vmul.f32 %v1018, %v1010
        %v1027 = vmul.f32 %v1019, %v1011
        %1029 = vset.pattern.permute.xlu0 0
        %1030 = vperm.xlu0 %1029, %v946
        %v1031 = vpop.permute.xlu0 %1030
        %1034 = vset.pattern.permute.xlu0 0
        %1035 = vperm.xlu0 %1034, %v947
        %v1036 = vpop.permute.xlu0 %1035
        %1039 = vset.pattern.permute.xlu0 0
        %1040 = vperm.xlu0 %1039, %v948
        %v1041 = vpop.permute.xlu0 %1040
        %1044 = vset.pattern.permute.xlu0 0
        %1045 = vperm.xlu0 %1044, %v949
        %v1046 = vpop.permute.xlu0 %1045
        %v1048 = vmul.f32 %v1020, %v1031
        %v1049 = vmul.f32 %v1021, %v1031
        %v1050 = vmul.f32 %v1022, %v1036
        %v1051 = vmul.f32 %v1023, %v1036
        %v1052 = vmul.f32 %v1024, %v1041
        %v1053 = vmul.f32 %v1025, %v1041
        %v1054 = vmul.f32 %v1026, %v1046
        %v1055 = vmul.f32 %v1027, %v1046
        %1057 = vset.pattern.permute.xlu0 0
        %1058 = vperm.xlu0 %1057, %v950
        %v1059 = vpop.permute.xlu0 %1058
        %1062 = vset.pattern.permute.xlu0 0
        %1063 = vperm.xlu0 %1062, %v951
        %v1064 = vpop.permute.xlu0 %1063
        %1067 = vset.pattern.permute.xlu0 0
        %1068 = vperm.xlu0 %1067, %v952
        %v1069 = vpop.permute.xlu0 %1068
        %1072 = vset.pattern.permute.xlu0 0
        %1073 = vperm.xlu0 %1072, %v953
        %v1074 = vpop.permute.xlu0 %1073
        %v1076 = vadd.f32 %v1048, %v1059
        %v1077 = vadd.f32 %v1049, %v1059
        %v1078 = vadd.f32 %v1050, %v1064
        %v1079 = vadd.f32 %v1051, %v1064
        %v1080 = vadd.f32 %v1052, %v1069
        %v1081 = vadd.f32 %v1053, %v1069
        %v1082 = vadd.f32 %v1054, %v1074
        %v1083 = vadd.f32 %v1055, %v1074
        %v1084 = vld [vmem:[%s9] sm:$0xf]
        %v1085 = vpack.c.bf16 %v1078, %v1076
        %v1086 = vpack.c.bf16 %v1079, %v1077
        %v1087 = vpack.c.bf16 %v1082, %v1080
        %v1088 = vpack.c.bf16 %v1083, %v1081
        %v1089 = vld [vmem:[%s10] sm:$0xff]
        %1091 = vset.pattern.permute.xlu0 0
        %1092 = vperm.xlu0 %1091, %v1089
        %v1093 = vpop.permute.xlu0 %1092
        %v1096 = vsel %vm838, %v1084, 0
        %1098 = vmatprep.subr.bf16.mxu0 %v1086
        %1099 = vmatpush1.bf16.msra.mxu0 %v1085
        %1100 = vmatprep.subr.bf16.mxu0 %v1088
        %1101 = vmatpush1.bf16.msra.mxu0 %v1087
        %1102 = vmatprep.subr.bf16.mxu0 0
        %1103 = vmatpush1.bf16.msra.mxu0 0
        %1104 = vmatprep.subr.bf16.mxu0 0
        %1105 = vmatpush1.bf16.msra.mxu0 0
        %1106 = vmatprep.subr.bf16.mxu0 0
        %1107 = vmatpush1.bf16.msra.mxu0 0
        %1108 = vmatprep.subr.bf16.mxu0 0
        %1109 = vmatpush1.bf16.msra.mxu0 0
        %1110 = vmatprep.subr.bf16.mxu0 0
        %1111 = vmatpush1.bf16.msra.mxu0 0
        %1112 = vmatprep.subr.bf16.mxu0 0
        %1113 = vmatpush1.bf16.msra.mxu0 0
        %1114 = vmatprep.subr.bf16.mxu0 0
        %1115 = vmatpush1.bf16.msra.mxu0 0
        %1116 = vmatprep.subr.bf16.mxu0 0
        %1117 = vmatpush1.bf16.msra.mxu0 0
        %1118 = vmatprep.subr.bf16.mxu0 0
        %1119 = vmatpush1.bf16.msra.mxu0 0
        %1120 = vmatprep.subr.bf16.mxu0 0
        %1121 = vmatpush1.bf16.msra.mxu0 0
        %1122 = vmatprep.subr.bf16.mxu0 0
        %1123 = vmatpush1.bf16.msra.mxu0 0
        %1124 = vmatprep.subr.bf16.mxu0 0
        %1125 = vmatpush1.bf16.msra.mxu0 0
        %1126 = vmatprep.subr.bf16.mxu0 0
        %1127 = vmatpush1.bf16.msra.mxu0 0
        %1128 = vmatprep.subr.bf16.mxu0 0
        %1129 = vmatpush1.bf16.msra.mxu0 0
        %1130 = vmatprep.mubr.bf16.mxu0 0
        %1131 = vmatmul.mubr.bf16.gmra.mrb[0].mxu0 %v1096
        %v1132 = vpop.f32.mrb[0].mxu0
        %v1133 = vadd.f32 %v1093, %v1132
        %v1134 = vpop.f32.mrb[0].mxu0
        %v1135 = vadd.f32 %v1093, %v1134
        %v1136 = vpop.f32.mrb[0].mxu0
        %v1137 = vpop.f32.mrb[0].mxu0
        %1138 = vdwg.mxu0
        %v1139 = vld [vmem:[%s11] sm:$0xff]
        %v1140 = vld [vmem:[%s490] sm:$0xff]
        %v1141 = vld [vmem:[%s490 + $0x8] sm:$0xff]
        %1143 = vset.pattern.permute.xlu0 0
        %1144 = vperm.xlu0 %1143, %v1139
        %v1145 = vpop.permute.xlu0 %1144
        %v1147 = vmul.f32 %v1145, %v1140
        %v1148 = vmul.f32 %v1145, %v1141
        %v1149 = vadd.f32 %v1133, %v1147
        %v1150 = vadd.f32 %v1135, %v1148
        %1151 = vst [vmem:[%s484] sm:$0xff] %v1149
        %1152 = vst [vmem:[%s484 + $0x8] sm:$0xff] %v1150
        %s1153 = sand.u32 %s318, 1
        %s1154 = scalar_lea.sflag [#allocation4], %s1153
        %s1155 = sand.u32 %s318, 1
        %s1156 = smul.addr %s1155, 16
        %s1157 = scalar_lea.vmem [#allocation3], %s1156
        // Predicated region
        $region96: #{tpu_custom_call.1} parent=90 // pred_check
          %p1158 = pneg %p328
        $region97: #{tpu_custom_call.1} parent=90 // pred_check_branch
          %1160 = sbr.rel (%p1158) target = $region99
        $region98: #{tpu_custom_call.1} parent=90 // pred_region
          %s1161 = smul.u32 2, %s27
          %s1163 = ssub.s32 256, 256
          %1164 = vsyncadd %s1154, %s1163
          %s1165 = smul.addr %s1161, 128
          %s1166 = scalar_lea.hbm %s13, %s1165
          %s1168 = sshll.u32 %s1157, 4
          %s1169 = int_to_ptr.vmem [resolvable:$true] %s1168
          %1171 = dma.vmem_to_hbm [thread:$0]  %s1169, 256, %s1166, %s1154
        $region99: #{tpu_custom_call.1} parent=90 // pred_fallthru
          _
      $region91: #{tpu_custom_call.1} parent=5 // pred_fallthru
        _
      %p1172 = scmp.le.s32.totalorder 2, %s22
      // Predicated region
      $region100: #{tpu_custom_call.1} parent=5 // pred_check
        %p1173 = pneg %p1172
      $region101: #{tpu_custom_call.1} parent=5 // pred_check_branch
        %1175 = sbr.rel (%p1173) target = $region103
      $region102: #{tpu_custom_call.1} parent=5 // pred_region
        %s1176 = ssub.s32 %s22, 2
        // Predicated region
        $region104: #{tpu_custom_call.1} parent=102 // pred_check
          %p1177 = pneg %p334
        $region105: #{tpu_custom_call.1} parent=102 // pred_check_branch
          %1179 = sbr.rel (%p1177) target = $region107
        $region106: #{tpu_custom_call.1} parent=102 // pred_region
          %s1180 = sand.u32 %s319, 1
          %s1181 = scalar_lea.sflag [#allocation4], %s1180
          %s1182 = sand.u32 %s319, 1
          %s1183 = smul.addr %s1182, 16
          %s1184 = scalar_lea.vmem [#allocation3], %s1183
          %1185 = dma.done %s1181, 256
        $region107: #{tpu_custom_call.1} parent=102 // pred_fallthru
          _
      $region103: #{tpu_custom_call.1} parent=5 // pred_fallthru
        _
    $region6: #{tpu_custom_call.1} parent=1 // loop_footer
      %s26 = sadd.s32 1, %s22
    $region7: #{tpu_custom_call.1} parent=1 // loop_footer_branch
      %21 = sbr.rel target = $region3
    $region8: #{tpu_custom_call.1} parent=1 // loop_exit
      _
    %1186 = vsyncpa [#allocation4], 1
    %s1187 = scalar_lea.sflag [#allocation4], 1
    %1188 = vsyncpa %s1187, 1

</llo_original>
